<compile_context>
chip_gen: v7x
topology: tpu7x:2x2x1
jax: 0.10.0
libtpu: 0.0.40
codegen_flags: <defaults>
</compile_context>

<pallas_src>
from typing import Any, Dict, Optional

import jax
import jax.numpy as jnp
import numpy as np
from jax.experimental import pallas as pl
from jax.experimental.pallas import tpu as pltpu


def _round_up(x: int, m: int) -> int:
    return ((x + m - 1) // m) * m


# --------------------------------------------------------------------------
# Pallas kernel: all cell-property heads as two wide matmuls, grid over batch.
#   x:   (tile_B, D_pad)    bf16   (col D is the constant-1 bias lane)
#   w1:  (D_pad,  H_pack)   bf16   (row D holds all heads' b1; col P*H is the
#                                   hidden bias lane)
#   w2:  (H_pack, T_pack)   bf16   (block-diagonal per head; row P*H holds b2)
#   out: (tile_B, T_pack)   f32    lane-dense (T_pack multiple of 128)
# --------------------------------------------------------------------------
def _decoder_kernel(x_ref, w1_ref, w2_ref, o_ref):
    h = jnp.dot(x_ref[...], w1_ref[...],
                preferred_element_type=jnp.float32)          # (tile_B, H_pack) f32
    h = jnp.maximum(h, 0.0)                                  # ReLU (bias lane stays 1)
    y = jnp.dot(h.astype(jnp.bfloat16), w2_ref[...],
                preferred_element_type=jnp.float32)          # (tile_B, T_pack) f32
    o_ref[...] = y.astype(o_ref.dtype)


def fused_decoder_heads(x, w1, w2, *, tile_b, vmem_limit_bytes=None):
    """All property heads in one pallas_call; batch axis is the (parallel) grid."""
    B_pad, D_pad = x.shape
    H_pack = w1.shape[1]
    T_pack = w2.shape[1]
    assert B_pad % tile_b == 0
    cp_kwargs = dict(dimension_semantics=("parallel",))      # batch tiles -> 2-TC on v7x
    if vmem_limit_bytes is not None:
        cp_kwargs["vmem_limit_bytes"] = int(vmem_limit_bytes)
    return pl.pallas_call(
        _decoder_kernel,
        out_shape=jax.ShapeDtypeStruct((B_pad, T_pack), jnp.float32),
        grid=(B_pad // tile_b,),
        in_specs=[
            pl.BlockSpec((tile_b, D_pad), lambda i: (i, 0)),   # batch-tiled activations
            pl.BlockSpec((D_pad, H_pack), lambda i: (0, 0)),   # packed layer-1 weights
            pl.BlockSpec((H_pack, T_pack), lambda i: (0, 0)),  # packed layer-2 weights
        ],
        out_specs=pl.BlockSpec((tile_b, T_pack), lambda i: (i, 0)),
        compiler_params=pltpu.CompilerParams(**cp_kwargs),
    )(x, w1, w2)


def _pick_tile_b(B, D_pad, H_pack, T_pack, budget_bytes=12 * 1024 * 1024):
    """Largest batch tile (multiple of 16) that keeps the VMEM estimate v5e-safe."""
    per_row = 2 * D_pad * 2 + 2 * T_pack * 4 + H_pack * (4 + 2)   # x(2buf) + out(2buf) + h
    weights = 2 * (D_pad * H_pack + H_pack * T_pack) * 2          # double-buffered bf16
    tile = 512
    while tile > 16 and weights + tile * per_row > budget_bytes:
        tile //= 2
    tile = min(tile, _round_up(max(B, 16), 16))
    return max(16, (tile // 16) * 16)


def _vmem_estimate(tile_b, D_pad, H_pack, T_pack):
    return (2 * tile_b * D_pad * 2          # x, double-buffered bf16
            + 2 * tile_b * T_pack * 4       # out, double-buffered f32
            + 2 * (D_pad * H_pack + H_pack * T_pack) * 2   # weights, double-buffered bf16
            + tile_b * H_pack * (4 + 2))    # h (f32) + bf16 copy


# --------------------------------------------------------------------------
# CellDecoder in JAX (parameter setup + glue), Pallas for the fused heads.
# --------------------------------------------------------------------------
class CellDecoderPallas:
    def __init__(
        self,
        latent_dim: int,
        cell_properties: Dict[str, Any],
        batch_properties: Optional[Dict[str, Any]] = None,
        grad_reverse_dict: Optional[Dict] = None,
        use_hidden_layer: bool = True,
        dropout_rate: float = 0.5,
        rng_key: jax.Array = None,
    ):
        self.batch_dims = (
            0
            if batch_properties is None
            else [len(batch_properties[k]["values"]) for k in batch_properties.keys()]
        )
        self.latent_dim = int(latent_dim + np.sum(self.batch_dims))
        self.cell_properties = cell_properties
        self.grad_reverse_dict = grad_reverse_dict
        # TODO(synk): only the use_hidden_layer=True variant is implemented.
        assert use_hidden_layer, "only the hidden-layer variant is implemented"
        # TODO(synk): GradReverseLayer / stop_grad only affect the backward pass and
        #             batch_drop (Dropout) is never applied in forward(); identity here.

        if rng_key is None:
            rng_key = jax.random.PRNGKey(0)

        D = self.latent_dim
        H = 2 * self.latent_dim
        self.prop_names = list(cell_properties.keys())
        P = len(self.prop_names)

        # Deterministic parameter init (synthetic, not a checkpoint load).
        # True-shape f32 params kept for the pure-JAX references.
        self.n_targets = []
        self.params = {}
        for k, cell_prop in cell_properties.items():
            t = 1 if not cell_prop["discrete"] else len(cell_prop["values"])
            self.n_targets.append(t)
            rng_key, k1, k2, k3, k4 = jax.random.split(rng_key, 5)
            s1 = 1.0 / np.sqrt(D)
            s2 = 1.0 / np.sqrt(H)
            self.params[k] = dict(
                w1=jax.random.uniform(k1, (D, H), jnp.float32, -s1, s1),
                b1=jax.random.uniform(k2, (H,), jnp.float32, -s1, s1),
                w2=jax.random.uniform(k3, (H, t), jnp.float32, -s2, s2),
                b2=jax.random.uniform(k4, (t,), jnp.float32, -s2, s2),
            )

        # ----- packed, lane-dense kernel weights (bias folding included) -----
        self.D_pad = _round_up(D + 1, 128)          # +1: constant-1 bias lane in x
        n_hidden = P * H + 1                        # +1: constant-1 hidden bias lane
        self.H_pack = _round_up(n_hidden, 128)
        self.t_off = [0]
        for t in self.n_targets:
            self.t_off.append(self.t_off[-1] + t)
        T_sum = self.t_off[-1]
        self.T_pack = _round_up(T_sum, 128)

        w1s = np.zeros((self.D_pad, self.H_pack), np.float32)
        w2s = np.zeros((self.H_pack, self.T_pack), np.float32)
        for i, k in enumerate(self.prop_names):
            p = self.params[k]
            t = self.n_targets[i]
            c0 = i * H
            w1s[:D, c0:c0 + H] = np.asarray(p["w1"])
            w1s[D, c0:c0 + H] = np.asarray(p["b1"])              # folded b1 (x bias lane)
            w2s[c0:c0 + H, self.t_off[i]:self.t_off[i] + t] = np.asarray(p["w2"])
            w2s[P * H, self.t_off[i]:self.t_off[i] + t] = np.asarray(p["b2"])  # folded b2
        w1s[D, P * H] = 1.0                                      # hidden bias lane == 1
        self._w1 = jnp.asarray(w1s, jnp.bfloat16)                # bf16 weights, f32 acc
        self._w2 = jnp.asarray(w2s, jnp.bfloat16)

        # Single jit over glue + fused kernel + output slicing.
        self._jit_forward = jax.jit(self._forward_impl)

    # ---- shared glue (matches the torch forward's one-hot/concat logic) ----
    def _build_latent(self, latent, batch_vals, batch_mask):
        if batch_vals is not None and batch_mask is not None:
            bv = jnp.where(batch_vals < 0, 0, batch_vals)  # batch_vals[batch_vals<0]=0
            batch_vars = []
            for n in range(len(self.batch_dims)):
                b = jax.nn.one_hot(bv[:, n], self.batch_dims[n], dtype=latent.dtype)
                b = b * batch_mask[:, n: n + 1].astype(latent.dtype)
                batch_vars.append(b)
            latent = jnp.concatenate((latent, *batch_vars), axis=-1)
        return latent

    # ---- jitted forward ----
    def _forward_impl(self, latent, batch_vals, batch_mask):
        latent = self._build_latent(latent, batch_vals, batch_mask)
        B, D = latent.shape
        tile_b = _pick_tile_b(B, self.D_pad, self.H_pack, self.T_pack)
        B_pad = _round_up(B, tile_b)
        # Build x directly in bf16 (no padded f32 intermediate); col D is the
        # constant-1 lane carrying the folded first-layer bias.
        x = jnp.zeros((B_pad, self.D_pad), jnp.bfloat16)
        x = x.at[:B, :D].set(latent.astype(jnp.bfloat16))
        x = x.at[:B, D].set(jnp.ones((B,), jnp.bfloat16))
        est = _vmem_estimate(tile_b, self.D_pad, self.H_pack, self.T_pack)
        vmem_limit = None
        if est > 12 * 1024 * 1024:
            # TODO(synk): at this size, also H-tile the weights (second grid axis).
            vmem_limit = min(2 * est, 96 * 1024 * 1024)
        out = fused_decoder_heads(x, self._w1, self._w2,
                                  tile_b=tile_b, vmem_limit_bytes=vmem_limit)
        # Slice the shared (B_pad, T_pack) slab back to per-property outputs.
        return {
            k: out[:B, self.t_off[i]: self.t_off[i] + self.n_targets[i]]
            for i, k in enumerate(self.prop_names)
        }

    def __call__(self, latent, batch_vals=None, batch_mask=None):
        return self._jit_forward(latent, batch_vals, batch_mask)

    # ---- pure-JAX references for correctness checking ----
    def reference_f32(self, latent, batch_vals=None, batch_mask=None):
        latent = self._build_latent(latent, batch_vals, batch_mask)
        out = {}
        for k in self.prop_names:
            p = self.params[k]
            h = jnp.maximum(latent @ p["w1"] + p["b1"], 0.0)
            out[k] = h @ p["w2"] + p["b2"]
        return out

    def reference_bf16(self, latent, batch_vals=None, batch_mask=None):
        """Mirrors the kernel's bf16-input / f32-accumulate / bf16-bias arithmetic."""
        latent = self._build_latent(latent, batch_vals, batch_mask)
        xb = latent.astype(jnp.bfloat16)
        out = {}
        for k in self.prop_names:
            p = self.params[k]
            b1b = p["b1"].astype(jnp.bfloat16).astype(jnp.float32)
            b2b = p["b2"].astype(jnp.bfloat16).astype(jnp.float32)
            h = jnp.dot(xb, p["w1"].astype(jnp.bfloat16),
                        preferred_element_type=jnp.float32) + b1b
            h = jnp.maximum(h, 0.0)
            out[k] = jnp.dot(h.astype(jnp.bfloat16), p["w2"].astype(jnp.bfloat16),
                             preferred_element_type=jnp.float32) + b2b
        return out


# --------------------------------------------------------------------------
# Example run
# --------------------------------------------------------------------------
if __name__ == "__main__":
    key = jax.random.PRNGKey(0)

    B = 8
    base_latent_dim = 32
    cell_properties = {
        "cell_type": {"discrete": True, "values": ["a", "b", "c", "d", "e"], "stop_grad": False},
        "age": {"discrete": False, "values": [], "stop_grad": True},
        "response": {"discrete": True, "values": [0, 1, 2], "stop_grad": False},
    }
    batch_properties = {
        "donor": {"values": [0, 1, 2, 3]},   # 4 classes
        "site": {"values": [0, 1, 2]},       # 3 classes
    }
    grad_reverse_dict = {"response": 0.1}    # identity in forward

    k_lat, k_bv1, k_bv2, k_bm, k_params = jax.random.split(key, 5)
    latent = jax.random.normal(k_lat, (B, base_latent_dim), jnp.float32)
    # Per-column valid ranges (plus -1 to exercise the clamp), matching torch's
    # F.one_hot contract (out-of-range values would raise in the torch module).
    bv_donor = jax.random.randint(k_bv1, (B, 1), -1, 4, dtype=jnp.int32)
    bv_site = jax.random.randint(k_bv2, (B, 1), -1, 3, dtype=jnp.int32)
    batch_vals = jnp.concatenate([bv_donor, bv_site], axis=1)
    batch_mask = (jax.random.uniform(k_bm, (B, 2)) > 0.3).astype(jnp.float32)

    decoder = CellDecoderPallas(
        latent_dim=base_latent_dim,
        cell_properties=cell_properties,
        batch_properties=batch_properties,
        grad_reverse_dict=grad_reverse_dict,
        use_hidden_layer=True,
        rng_key=k_params,
    )

    out = decoder(latent, batch_vals, batch_mask)
    out = jax.tree_util.tree_map(jax.block_until_ready, out)

    # Tight check vs a bf16-mirroring reference, loose check vs the f32 reference
    # (bf16 weights/activations/biases with f32 accumulation in the kernel).
    ref_bf16 = decoder.reference_bf16(latent, batch_vals, batch_mask)
    ref_f32 = decoder.reference_f32(latent, batch_vals, batch_mask)
    for i, k in enumerate(cell_properties):
        assert out[k].shape == (B, decoder.n_targets[i])
        np.testing.assert_allclose(np.asarray(out[k]), np.asarray(ref_bf16[k]),
                                   rtol=2e-3, atol=2e-3)
        np.testing.assert_allclose(np.asarray(out[k]), np.asarray(ref_f32[k]),
                                   rtol=3e-2, atol=3e-2)

    print("KERNEL_OK")
</pallas_src>

<mosaic_0001>
module attributes {stable_mosaic.version = 11 : i64} {
  func.func @_decoder_kernel(%arg0: i32, %arg1: memref<16x128xbf16, #tpu.memory_space<vmem>>, %arg2: memref<128x256xbf16, #tpu.memory_space<vmem>>, %arg3: memref<256x128xbf16, #tpu.memory_space<vmem>>, %arg4: memref<16x128xf32, #tpu.memory_space<vmem>>) attributes {dimension_semantics = [#tpu.dimension_semantics<parallel>], iteration_bounds = array<i64: 1>, scalar_prefetch = 0 : i64, scratch_operands = 0 : i64, tpu.core_type = #tpu.core_type<tc>, window_params = [{transform_indices = @transform_0, window_bounds = array<i64: 16, 128>}, {pipeline_mode = #tpu.pipeline_mode<synchronous>, transform_indices = @transform_1, window_bounds = array<i64: 128, 256>}, {pipeline_mode = #tpu.pipeline_mode<synchronous>, transform_indices = @transform_2, window_bounds = array<i64: 256, 128>}, {transform_indices = @transform_3, window_bounds = array<i64: 16, 128>}]} {
    %c0 = arith.constant 0 : index
    %c0_0 = arith.constant 0 : index
    %0 = vector.load %arg1[%c0, %c0_0] : memref<16x128xbf16, #tpu.memory_space<vmem>>, vector<16x128xbf16>
    %c0_1 = arith.constant 0 : index
    %c0_2 = arith.constant 0 : index
    %1 = vector.load %arg2[%c0_1, %c0_2] : memref<128x256xbf16, #tpu.memory_space<vmem>>, vector<128x256xbf16>
    %cst = arith.constant dense<0.000000e+00> : vector<16x256xf32>
    %2 = tpu.matmul %0, %1, %cst {dimension_numbers = #tpu.dot_dimension_numbers<[1], [0], [0], [1], [0, 0, 1, 1], [], []>} : vector<16x128xbf16>, vector<128x256xbf16>, vector<16x256xf32> -> vector<16x256xf32>
    %cst_3 = arith.constant 0.000000e+00 : f32
    %3 = vector.broadcast %cst_3 : f32 to vector<16x256xf32>
    %4 = arith.maximumf %2, %3 : vector<16x256xf32>
    %5 = arith.truncf %4 : vector<16x256xf32> to vector<16x256xbf16>
    %c0_4 = arith.constant 0 : index
    %c0_5 = arith.constant 0 : index
    %6 = vector.load %arg3[%c0_4, %c0_5] : memref<256x128xbf16, #tpu.memory_space<vmem>>, vector<256x128xbf16>
    %cst_6 = arith.constant dense<0.000000e+00> : vector<16x128xf32>
    %7 = tpu.matmul %5, %6, %cst_6 {dimension_numbers = #tpu.dot_dimension_numbers<[1], [0], [0], [1], [0, 0, 1, 1], [], []>} : vector<16x256xbf16>, vector<256x128xbf16>, vector<16x128xf32> -> vector<16x128xf32>
    %c0_7 = arith.constant 0 : index
    %c0_8 = arith.constant 0 : index
    %8 = vector.load %arg4[%c0_7, %c0_8] : memref<16x128xf32, #tpu.memory_space<vmem>>, vector<16x128xf32>
    tpu.vector_store %arg4[%c0_7, %c0_8], %7 {strides = array<i32>} : memref<16x128xf32, #tpu.memory_space<vmem>>, vector<16x128xf32>,
    return
  }
  func.func @transform_0(%arg0: i32) -> (i32, i32) {
    %c0_i32 = arith.constant 0 : i32
    %c0_i32_0 = arith.constant 0 : i32
    return %arg0, %c0_i32 : i32, i32
  }
  func.func @transform_1(%arg0: i32) -> (i32, i32) {
    %c0_i32 = arith.constant 0 : i32
    %c0_i32_0 = arith.constant 0 : i32
    %c0_i32_1 = arith.constant 0 : i32
    return %c0_i32, %c0_i32_0 : i32, i32
  }
  func.func @transform_2(%arg0: i32) -> (i32, i32) {
    %c0_i32 = arith.constant 0 : i32
    %c0_i32_0 = arith.constant 0 : i32
    %c0_i32_1 = arith.constant 0 : i32
    return %c0_i32, %c0_i32_0 : i32, i32
  }
  func.func @transform_3(%arg0: i32) -> (i32, i32) {
    %c0_i32 = arith.constant 0 : i32
    %c0_i32_0 = arith.constant 0 : i32
    return %arg0, %c0_i32 : i32, i32
  }
}

</mosaic_0001>

<llo_original>
// kernel: _forward_impl.1
$region0: #{_forward_impl.1}
  #allocation0 [shape = 'u32[]', space=smem, size = 0x4, offset = 0x4, fixed_abs, tag = 'smem constant byte address 0x4 - core index']
  #allocation1 [shape = 'u32[144,128]{1,0:T(1,128)}', space=vmem, size = 0x12000, scoped, tag = 'internal scratch']
  %s0 = inlined_call_operand.vmem [shape: bf16[16,128], index: 0, kind: input, shape index: {}]
  %s1 = inlined_call_operand.vmem [shape: bf16[128,256], index: 1, kind: input, shape index: {}]
  %s2 = inlined_call_operand.vmem [shape: bf16[256,128], index: 2, kind: input, shape index: {}]
  %s3 = inlined_call_operand.vmem [shape: f32[16,128], index: 3, kind: output, shape index: {}]
  %s4 = sld [smem:[#allocation0]]
  $region22: #{_forward_impl.1} parent=0
    _
  %s6 = ssub.s32 1, %s4
  %s7 = scalar_select 0, %s6, %s4
  // Predicated region
  $region2: #{_forward_impl.1} parent=0 // pred_check
    _
  $region3: #{_forward_impl.1} parent=0 // pred_check_branch
    %9 = sbr.rel (0) target = $region5
  $region4: #{_forward_impl.1} parent=0 // pred_region
    _
  $region5: #{_forward_impl.1} parent=0 // pred_fallthru
    _
  // Predicated region
  $region6: #{_forward_impl.1} parent=0 // pred_check
    _
  $region7: #{_forward_impl.1} parent=0 // pred_check_branch
    %11 = sbr.rel (0) target = $region9
  $region8: #{_forward_impl.1} parent=0 // pred_region
    _
  $region9: #{_forward_impl.1} parent=0 // pred_fallthru
    _
  // Predicated region
  $region10: #{_forward_impl.1} parent=0 // pred_check
    _
  $region11: #{_forward_impl.1} parent=0 // pred_check_branch
    %13 = sbr.rel (0) target = $region13
  $region12: #{_forward_impl.1} parent=0 // pred_region
    _
  $region13: #{_forward_impl.1} parent=0 // pred_fallthru
    _
  %v15 = vld [vmem:[%s0] sm:$0xf]
  %v16 = vld [vmem:[%s0 + $0x4] sm:$0xf]
  %v17 = vld [vmem:[%s1] sm:$0xff]
  %v18 = vld [vmem:[%s1 + $0x8] sm:$0xff]
  %v19 = vld [vmem:[%s1 + $0x10] sm:$0xff]
  %v20 = vld [vmem:[%s1 + $0x18] sm:$0xff]
  %v21 = vld [vmem:[%s1 + $0x20] sm:$0xff]
  %v22 = vld [vmem:[%s1 + $0x28] sm:$0xff]
  %v23 = vld [vmem:[%s1 + $0x30] sm:$0xff]
  %v24 = vld [vmem:[%s1 + $0x38] sm:$0xff]
  %v25 = vld [vmem:[%s1 + $0x40] sm:$0xff]
  %v26 = vld [vmem:[%s1 + $0x48] sm:$0xff]
  %v27 = vld [vmem:[%s1 + $0x50] sm:$0xff]
  %v28 = vld [vmem:[%s1 + $0x58] sm:$0xff]
  %v29 = vld [vmem:[%s1 + $0x60] sm:$0xff]
  %v30 = vld [vmem:[%s1 + $0x68] sm:$0xff]
  %v31 = vld [vmem:[%s1 + $0x70] sm:$0xff]
  %v32 = vld [vmem:[%s1 + $0x78] sm:$0xff]
  %v35 = vunpack.c.l.b16 %v15
  %v36 = vunpack.c.l.b16 %v16
  %v37 = vpack.c.b16 %v36, %v35
  %v55 = vunpack.c.l.b16 %v17
  %v56 = vunpack.c.h.b16 %v17
  %v57 = vunpack.c.l.b16 %v18
  %v58 = vunpack.c.h.b16 %v18
  %v59 = vunpack.c.l.b16 %v19
  %v60 = vunpack.c.h.b16 %v19
  %v61 = vunpack.c.l.b16 %v20
  %v62 = vunpack.c.h.b16 %v20
  %v63 = vunpack.c.l.b16 %v21
  %v64 = vunpack.c.h.b16 %v21
  %v65 = vunpack.c.l.b16 %v22
  %v66 = vunpack.c.h.b16 %v22
  %v67 = vunpack.c.l.b16 %v23
  %v68 = vunpack.c.h.b16 %v23
  %v69 = vunpack.c.l.b16 %v24
  %v70 = vunpack.c.h.b16 %v24
  %v71 = vunpack.c.l.b16 %v25
  %v72 = vunpack.c.h.b16 %v25
  %v73 = vunpack.c.l.b16 %v26
  %v74 = vunpack.c.h.b16 %v26
  %v75 = vunpack.c.l.b16 %v27
  %v76 = vunpack.c.h.b16 %v27
  %v77 = vunpack.c.l.b16 %v28
  %v78 = vunpack.c.h.b16 %v28
  %v79 = vunpack.c.l.b16 %v29
  %v80 = vunpack.c.h.b16 %v29
  %v81 = vunpack.c.l.b16 %v30
  %v82 = vunpack.c.h.b16 %v30
  %v83 = vunpack.c.l.b16 %v31
  %v84 = vunpack.c.h.b16 %v31
  %v85 = vunpack.c.l.b16 %v32
  %v86 = vunpack.c.h.b16 %v32
  %v87 = vpack.c.b16 %v57, %v55
  %v88 = vpack.c.b16 %v58, %v56
  %v89 = vpack.c.b16 %v61, %v59
  %v90 = vpack.c.b16 %v62, %v60
  %v91 = vpack.c.b16 %v65, %v63
  %v92 = vpack.c.b16 %v66, %v64
  %v93 = vpack.c.b16 %v69, %v67
  %v94 = vpack.c.b16 %v70, %v68
  %v95 = vpack.c.b16 %v73, %v71
  %v96 = vpack.c.b16 %v74, %v72
  %v97 = vpack.c.b16 %v77, %v75
  %v98 = vpack.c.b16 %v78, %v76
  %v99 = vpack.c.b16 %v81, %v79
  %v100 = vpack.c.b16 %v82, %v80
  %v101 = vpack.c.b16 %v85, %v83
  %v102 = vpack.c.b16 %v86, %v84
  %119 = vmatprep.subr.bf16.mxu0 %v88
  %120 = vmatpush1.bf16.msra.mxu0 %v87
  %121 = vmatprep.subr.bf16.mxu0 %v90
  %122 = vmatpush1.bf16.msra.mxu0 %v89
  %123 = vmatprep.subr.bf16.mxu0 %v92
  %124 = vmatpush1.bf16.msra.mxu0 %v91
  %125 = vmatprep.subr.bf16.mxu0 %v94
  %126 = vmatpush1.bf16.msra.mxu0 %v93
  %127 = vmatprep.subr.bf16.mxu0 %v96
  %128 = vmatpush1.bf16.msra.mxu0 %v95
  %129 = vmatprep.subr.bf16.mxu0 %v98
  %130 = vmatpush1.bf16.msra.mxu0 %v97
  %131 = vmatprep.subr.bf16.mxu0 %v100
  %132 = vmatpush1.bf16.msra.mxu0 %v99
  %133 = vmatprep.subr.bf16.mxu0 %v102
  %134 = vmatpush1.bf16.msra.mxu0 %v101
  %135 = vmatprep.subr.bf16.mxu0 0
  %136 = vmatpush1.bf16.msra.mxu0 0
  %137 = vmatprep.subr.bf16.mxu0 0
  %138 = vmatpush1.bf16.msra.mxu0 0
  %139 = vmatprep.subr.bf16.mxu0 0
  %140 = vmatpush1.bf16.msra.mxu0 0
  %141 = vmatprep.subr.bf16.mxu0 0
  %142 = vmatpush1.bf16.msra.mxu0 0
  %143 = vmatprep.subr.bf16.mxu0 0
  %144 = vmatpush1.bf16.msra.mxu0 0
  %145 = vmatprep.subr.bf16.mxu0 0
  %146 = vmatpush1.bf16.msra.mxu0 0
  %147 = vmatprep.subr.bf16.mxu0 0
  %148 = vmatpush1.bf16.msra.mxu0 0
  %149 = vmatprep.subr.bf16.mxu0 0
  %150 = vmatpush1.bf16.msra.mxu0 0
  %151 = vmatprep.mubr.bf16.mxu0 0
  %152 = vmatmul.mubr.bf16.gmra.mrb[0].mxu0 %v37
  %v153 = vpop.f32.mrb[0].mxu0
  %v154 = vadd.f32 0.0, %v153
  %v155 = vpop.f32.mrb[0].mxu0
  %v156 = vadd.f32 0.0, %v155
  %v157 = vpop.f32.mrb[0].mxu0
  %v158 = vadd.f32 0.0, %v157
  %v159 = vpop.f32.mrb[0].mxu0
  %v160 = vadd.f32 0.0, %v159
  %161 = vdwg.mxu0
  %v162 = vmax.f32 %v154, 0.0
  %v163 = vmax.f32 %v156, 0.0
  %v164 = vmax.f32 %v158, 0.0
  %v165 = vmax.f32 %v160, 0.0
  %v166 = vpack.c.bf16 %v164, %v162
  %v167 = vpack.c.bf16 %v165, %v163
  %v168 = vld [vmem:[%s2] sm:$0xf]
  %v169 = vld [vmem:[%s2 + $0x4] sm:$0xf]
  %v170 = vld [vmem:[%s2 + $0x8] sm:$0xf]
  %v171 = vld [vmem:[%s2 + $0xc] sm:$0xf]
  %v172 = vld [vmem:[%s2 + $0x10] sm:$0xf]
  %v173 = vld [vmem:[%s2 + $0x14] sm:$0xf]
  %v174 = vld [vmem:[%s2 + $0x18] sm:$0xf]
  %v175 = vld [vmem:[%s2 + $0x1c] sm:$0xf]
  %v176 = vld [vmem:[%s2 + $0x20] sm:$0xf]
  %v177 = vld [vmem:[%s2 + $0x24] sm:$0xf]
  %v178 = vld [vmem:[%s2 + $0x28] sm:$0xf]
  %v179 = vld [vmem:[%s2 + $0x2c] sm:$0xf]
  %v180 = vld [vmem:[%s2 + $0x30] sm:$0xf]
  %v181 = vld [vmem:[%s2 + $0x34] sm:$0xf]
  %v182 = vld [vmem:[%s2 + $0x38] sm:$0xf]
  %v183 = vld [vmem:[%s2 + $0x3c] sm:$0xf]
  %v184 = vld [vmem:[%s2 + $0x40] sm:$0xf]
  %v185 = vld [vmem:[%s2 + $0x44] sm:$0xf]
  %v186 = vld [vmem:[%s2 + $0x48] sm:$0xf]
  %v187 = vld [vmem:[%s2 + $0x4c] sm:$0xf]
  %v188 = vld [vmem:[%s2 + $0x50] sm:$0xf]
  %v189 = vld [vmem:[%s2 + $0x54] sm:$0xf]
  %v190 = vld [vmem:[%s2 + $0x58] sm:$0xf]
  %v191 = vld [vmem:[%s2 + $0x5c] sm:$0xf]
  %v192 = vld [vmem:[%s2 + $0x60] sm:$0xf]
  %v193 = vld [vmem:[%s2 + $0x64] sm:$0xf]
  %v194 = vld [vmem:[%s2 + $0x68] sm:$0xf]
  %v195 = vld [vmem:[%s2 + $0x6c] sm:$0xf]
  %v196 = vld [vmem:[%s2 + $0x70] sm:$0xf]
  %v197 = vld [vmem:[%s2 + $0x74] sm:$0xf]
  %v198 = vld [vmem:[%s2 + $0x78] sm:$0xf]
  %v199 = vld [vmem:[%s2 + $0x7c] sm:$0xf]
  %v232 = vunpack.c.l.b16 %v168
  %v233 = vunpack.c.l.b16 %v169
  %v234 = vunpack.c.l.b16 %v170
  %v235 = vunpack.c.l.b16 %v171
  %v236 = vunpack.c.l.b16 %v172
  %v237 = vunpack.c.l.b16 %v173
  %v238 = vunpack.c.l.b16 %v174
  %v239 = vunpack.c.l.b16 %v175
  %v240 = vunpack.c.l.b16 %v176
  %v241 = vunpack.c.l.b16 %v177
  %v242 = vunpack.c.l.b16 %v178
  %v243 = vunpack.c.l.b16 %v179
  %v244 = vunpack.c.l.b16 %v180
  %v245 = vunpack.c.l.b16 %v181
  %v246 = vunpack.c.l.b16 %v182
  %v247 = vunpack.c.l.b16 %v183
  %v248 = vunpack.c.l.b16 %v184
  %v249 = vunpack.c.l.b16 %v185
  %v250 = vunpack.c.l.b16 %v186
  %v251 = vunpack.c.l.b16 %v187
  %v252 = vunpack.c.l.b16 %v188
  %v253 = vunpack.c.l.b16 %v189
  %v254 = vunpack.c.l.b16 %v190
  %v255 = vunpack.c.l.b16 %v191
  %v256 = vunpack.c.l.b16 %v192
  %v257 = vunpack.c.l.b16 %v193
  %v258 = vunpack.c.l.b16 %v194
  %v259 = vunpack.c.l.b16 %v195
  %v260 = vunpack.c.l.b16 %v196
  %v261 = vunpack.c.l.b16 %v197
  %v262 = vunpack.c.l.b16 %v198
  %v263 = vunpack.c.l.b16 %v199
  %v264 = vpack.c.b16 %v233, %v232
  %v265 = vpack.c.b16 %v235, %v234
  %v266 = vpack.c.b16 %v237, %v236
  %v267 = vpack.c.b16 %v239, %v238
  %v268 = vpack.c.b16 %v241, %v240
  %v269 = vpack.c.b16 %v243, %v242
  %v270 = vpack.c.b16 %v245, %v244
  %v271 = vpack.c.b16 %v247, %v246
  %v272 = vpack.c.b16 %v249, %v248
  %v273 = vpack.c.b16 %v251, %v250
  %v274 = vpack.c.b16 %v253, %v252
  %v275 = vpack.c.b16 %v255, %v254
  %v276 = vpack.c.b16 %v257, %v256
  %v277 = vpack.c.b16 %v259, %v258
  %v278 = vpack.c.b16 %v261, %v260
  %v279 = vpack.c.b16 %v263, %v262
  %296 = vmatprep.subr.bf16.mxu0 0
  %297 = vmatpush1.bf16.msra.mxu0 %v264
  %298 = vmatprep.subr.bf16.mxu0 0
  %299 = vmatpush1.bf16.msra.mxu0 %v265
  %300 = vmatprep.subr.bf16.mxu0 0
  %301 = vmatpush1.bf16.msra.mxu0 %v266
  %302 = vmatprep.subr.bf16.mxu0 0
  %303 = vmatpush1.bf16.msra.mxu0 %v267
  %304 = vmatprep.subr.bf16.mxu0 0
  %305 = vmatpush1.bf16.msra.mxu0 %v268
  %306 = vmatprep.subr.bf16.mxu0 0
  %307 = vmatpush1.bf16.msra.mxu0 %v269
  %308 = vmatprep.subr.bf16.mxu0 0
  %309 = vmatpush1.bf16.msra.mxu0 %v270
  %310 = vmatprep.subr.bf16.mxu0 0
  %311 = vmatpush1.bf16.msra.mxu0 %v271
  %312 = vmatprep.subr.bf16.mxu0 0
  %313 = vmatpush1.bf16.msra.mxu0 %v272
  %314 = vmatprep.subr.bf16.mxu0 0
  %315 = vmatpush1.bf16.msra.mxu0 %v273
  %316 = vmatprep.subr.bf16.mxu0 0
  %317 = vmatpush1.bf16.msra.mxu0 %v274
  %318 = vmatprep.subr.bf16.mxu0 0
  %319 = vmatpush1.bf16.msra.mxu0 %v275
  %320 = vmatprep.subr.bf16.mxu0 0
  %321 = vmatpush1.bf16.msra.mxu0 %v276
  %322 = vmatprep.subr.bf16.mxu0 0
  %323 = vmatpush1.bf16.msra.mxu0 %v277
  %324 = vmatprep.subr.bf16.mxu0 0
  %325 = vmatpush1.bf16.msra.mxu0 %v278
  %326 = vmatprep.subr.bf16.mxu0 0
  %327 = vmatpush1.bf16.msra.mxu0 %v279
  %328 = vmatprep.mubr.bf16.mxu0 %v167
  %329 = vmatmul.mubr.bf16.gmra.mrb[0].mxu0 %v166
  %v330 = vpop.f32.mrb[0].mxu0
  %v331 = vadd.f32 0.0, %v330
  %v332 = vpop.f32.mrb[0].mxu0
  %v333 = vpop.f32.mrb[0].mxu0
  %v334 = vadd.f32 0.0, %v333
  %v335 = vpop.f32.mrb[0].mxu0
  %336 = vdwg.mxu0
  %337 = vst [vmem:[%s3] sm:$0xff] %v331
  %338 = vst [vmem:[%s3 + $0x8] sm:$0xff] %v334
  // Predicated region
  $region14: #{_forward_impl.1} parent=0 // pred_check
    _
  $region15: #{_forward_impl.1} parent=0 // pred_check_branch
    %340 = sbr.rel (0) target = $region17
  $region16: #{_forward_impl.1} parent=0 // pred_region
    _
  $region17: #{_forward_impl.1} parent=0 // pred_fallthru
    _
  // Predicated region
  $region18: #{_forward_impl.1} parent=0 // pred_check
    _
  $region19: #{_forward_impl.1} parent=0 // pred_check_branch
    %342 = sbr.rel (0) target = $region21
  $region20: #{_forward_impl.1} parent=0 // pred_region
    _
  $region21: #{_forward_impl.1} parent=0 // pred_fallthru
    _

</llo_original>
